<compile_context>
chip_gen: v7x
topology: tpu7x:2x2x1
jax: 0.10.0
libtpu: 0.0.40
codegen_flags: <defaults>
</compile_context>

<pallas_src>
import math
from functools import partial

import jax
import jax.numpy as jnp
from jax.experimental import pallas as pl
from jax.experimental.pallas import tpu as pltpu


def _round_up(x, m):
    return (x + m - 1) // m * m


def _pad2d(a, rows, cols, dtype):
    """Cast + zero-pad a 2-D array to (rows, cols); no-op pad when already sized."""
    a = a.astype(dtype)
    pr = rows - a.shape[0]
    pc = cols - a.shape[1]
    if pr or pc:
        a = jnp.pad(a, ((0, pr), (0, pc)))
    return a


def _gcn_kernel(adj_ref, feat_ref, *rest, project, feat_resident, tile_k):
    """One (row-tile i, k-tile) step of  out = (adj @ feat) [@ W] + bias.

    adj_ref  : (tile_m, tile_k)            adjacency tile, block (i, k)
    feat_ref : (tile_k, feat_w) streamed   OR (n_cols, feat_w) VMEM-resident
    w_ref    : (feat_w, out_f_p)           only when project=True
    b_ref    : (1, out_f_p)                f32 bias row
    out_ref  : (tile_m, out_f_p)           output row tile, resident across k
    acc_ref  : (tile_m, feat_w)            f32 accumulator for adj_tile @ feat
    """
    if project:
        w_ref, b_ref, out_ref, acc_ref = rest
    else:
        b_ref, out_ref, acc_ref = rest

    k = pl.program_id(1)

    @pl.when(k == 0)
    def _():
        acc_ref[...] = jnp.zeros_like(acc_ref)

    if feat_resident:
        start = pl.multiple_of(k * tile_k, tile_k)
        feat = feat_ref[pl.ds(start, tile_k), :]
    else:
        feat = feat_ref[...]

    # K-tiled matmul (adj row-tile @ feat), f32 accumulation on the MXU.
    acc_ref[...] += jnp.dot(adj_ref[...], feat,
                            preferred_element_type=jnp.float32)

    # Finalize once per row tile.
    @pl.when(k == pl.num_programs(1) - 1)
    def _():
        acc = acc_ref[...]
        if project:
            out = jnp.dot(acc.astype(w_ref.dtype), w_ref[...],
                          preferred_element_type=jnp.float32)
        else:
            out = acc
        out_ref[...] = (out + b_ref[...]).astype(out_ref.dtype)


def graph_convolution(X, adj, W, bias=None, *, tile_m=512, tile_k=512,
                      compute_dtype=jnp.bfloat16, out_dtype=jnp.float32,
                      feat_resident_bytes=8 << 20):
    """GCN layer forward: adj @ (X @ W) + bias  (dense adjacency)."""
    N, in_f = X.shape
    out_f = W.shape[1]
    assert adj.shape == (N, N)
    assert W.shape[0] == in_f

    itemsize = jnp.dtype(compute_dtype).itemsize
    out_f_p = _round_up(out_f, 128)          # lane-dense output stores

    # ---- association dispatch: tile over the narrower feature dimension ----
    if in_f < out_f:
        project = True                        # out = (adj @ X) @ W + b
        feat = X
        feat_w = _round_up(in_f, 128)
    else:
        project = False                       # out = adj @ (X @ W) + b
        feat = jnp.dot(X, W, preferred_element_type=jnp.float32)  # support (N,out_f)
        feat_w = out_f_p

    # ---- adaptive, MXU/HBM-friendly tiles; only pad when required ----
    tile_m = min(tile_m, _round_up(N, 128))
    tile_k = min(tile_k, _round_up(N, 128))
    n_rows = _round_up(N, tile_m)             # adj rows / output rows
    n_cols = _round_up(N, tile_k)             # reduction dim (adj cols / feat rows)

    adj_p = _pad2d(adj, n_rows, n_cols, compute_dtype)
    feat_p = _pad2d(feat, n_cols, feat_w, compute_dtype)
    if bias is None:
        b2d = jnp.zeros((1, out_f_p), jnp.float32)
    else:
        b2d = _pad2d(bias.reshape(1, out_f), 1, out_f_p, jnp.float32)

    # Keep the feature matrix fully VMEM-resident when small (removes the
    # per-row-tile re-read of the feat stream).
    feat_bytes = n_cols * feat_w * itemsize
    feat_resident = feat_bytes <= feat_resident_bytes

    grid = (n_rows // tile_m, n_cols // tile_k)

    # ---- specs ----
    adj_spec = pl.BlockSpec((tile_m, tile_k), lambda i, k: (i, k))
    if feat_resident:
        feat_spec = pl.BlockSpec((n_cols, feat_w), lambda i, k: (0, 0))
    else:
        feat_spec = pl.BlockSpec((tile_k, feat_w), lambda i, k: (k, 0))

    in_specs = [adj_spec, feat_spec]
    args = [adj_p, feat_p]
    if project:
        w_p = _pad2d(W, feat_w, out_f_p, compute_dtype)
        in_specs.append(pl.BlockSpec((feat_w, out_f_p), lambda i, k: (0, 0)))
        args.append(w_p)
    in_specs.append(pl.BlockSpec((1, out_f_p), lambda i, k: (0, 0)))
    args.append(b2d)

    out_spec = pl.BlockSpec((tile_m, out_f_p), lambda i, k: (i, 0))
    scratch = [pltpu.VMEM((tile_m, feat_w), jnp.float32)]

    # ---- VMEM budget (double-buffered inputs/outputs) + cost estimate ----
    out_itemsize = jnp.dtype(out_dtype).itemsize
    vmem_est = (2 * tile_m * tile_k * itemsize
                + 2 * (n_cols if feat_resident else tile_k) * feat_w * itemsize
                + (2 * feat_w * out_f_p * itemsize if project else 0)
                + 2 * out_f_p * 4
                + 2 * tile_m * out_f_p * out_itemsize
                + tile_m * feat_w * 4)
    vmem_limit = int(min(max(2 * vmem_est, 32 << 20), 100 << 20))

    flops = 2 * n_rows * n_cols * feat_w
    if project:
        flops += 2 * n_rows * feat_w * out_f_p
    feat_reads = 1 if feat_resident else (n_rows // tile_m)
    bytes_accessed = (n_rows * n_cols * itemsize
                      + feat_reads * n_cols * feat_w * itemsize
                      + (feat_w * out_f_p * itemsize if project else 0)
                      + out_f_p * 4
                      + n_rows * out_f_p * out_itemsize)

    out_p = pl.pallas_call(
        partial(_gcn_kernel, project=project, feat_resident=feat_resident,
                tile_k=tile_k),
        out_shape=jax.ShapeDtypeStruct((n_rows, out_f_p), out_dtype),
        grid_spec=pltpu.PrefetchScalarGridSpec(
            num_scalar_prefetch=0,
            grid=grid,
            in_specs=in_specs,
            out_specs=out_spec,
            scratch_shapes=scratch,
        ),
        compiler_params=pltpu.CompilerParams(
            dimension_semantics=("parallel", "arbitrary"),
            vmem_limit_bytes=vmem_limit,
        ),
        cost_estimate=pl.CostEstimate(
            flops=flops, transcendentals=0, bytes_accessed=bytes_accessed),
    )(*args)

    return out_p[:N, :out_f]


if __name__ == "__main__":
    key = jax.random.PRNGKey(0)

    def make_case(ck, N, in_f, out_f):
        kx, kadj, kw, kb = jax.random.split(ck, 4)
        # Deterministic init mirroring reset_parameters(): uniform(-stdv, stdv).
        stdv = 1.0 / math.sqrt(out_f)
        W = jax.random.uniform(kw, (in_f, out_f), minval=-stdv, maxval=stdv,
                               dtype=jnp.float32)
        b = jax.random.uniform(kb, (out_f,), minval=-stdv, maxval=stdv,
                               dtype=jnp.float32)
        X = jax.random.uniform(kx, (N, in_f), dtype=jnp.float32)
        A = (jax.random.uniform(kadj, (N, N)) < 0.1).astype(jnp.float32)
        A = A + jnp.eye(N, dtype=jnp.float32)           # self-loops
        A = A / jnp.sum(A, axis=1, keepdims=True)       # row-normalize
        return X, A, W, b

    k1, k2, k3 = jax.random.split(key, 3)
    cases = [
        ("in<out (fused-W projection path)", k1, 200, 96, 160),   # ragged N
        ("in>out (precomputed-support path)", k2, 256, 160, 48),  # out_f < 128
    ]
    for name, ck, N, in_f, out_f in cases:
        X, A, W, b = make_case(ck, N, in_f, out_f)
        ref = A @ (X @ W) + b

        # 1) f32 compute path — tight structural check.
        o32 = jax.block_until_ready(
            graph_convolution(X, A, W, b, compute_dtype=jnp.float32))
        assert o32.shape == (N, out_f), name
        assert jnp.allclose(o32, ref, atol=2e-4, rtol=2e-4), name

        # 2) bf16-input / f32-accumulate fast path (looser tolerance).
        o16 = jax.block_until_ready(graph_convolution(X, A, W, b))
        assert jnp.allclose(o16, ref, atol=5e-2, rtol=5e-2), name

        # 3) streamed-feat path (force the non-resident feature BlockSpec).
        ost = jax.block_until_ready(
            graph_convolution(X, A, W, b, compute_dtype=jnp.float32,
                              feat_resident_bytes=0))
        assert jnp.allclose(ost, ref, atol=2e-4, rtol=2e-4), name

    # bias=None path (module supports bias=False).
    X, A, W, _ = make_case(k3, 128, 64, 64)
    ref_nb = A @ (X @ W)
    onb = jax.block_until_ready(
        graph_convolution(X, A, W, None, compute_dtype=jnp.float32))
    assert jnp.allclose(onb, ref_nb, atol=2e-4, rtol=2e-4)

    print("KERNEL_OK")
</pallas_src>

<mosaic_0001>
module attributes {stable_mosaic.version = 11 : i64} {
  func.func @_gcn_kernel(%arg0: i32, %arg1: i32, %arg2: memref<256x256xf32, #tpu.memory_space<vmem>>, %arg3: memref<256x128xf32, #tpu.memory_space<vmem>>, %arg4: memref<128x256xf32, #tpu.memory_space<vmem>>, %arg5: memref<1x256xf32, #tpu.memory_space<vmem>>, %arg6: memref<256x256xf32, #tpu.memory_space<vmem>>, %arg7: memref<256x128xf32, #tpu.memory_space<vmem>>) attributes {dimension_semantics = [#tpu.dimension_semantics<parallel>, #tpu.dimension_semantics<arbitrary>], iteration_bounds = array<i64: 1, 1>, scalar_prefetch = 0 : i64, scratch_operands = 1 : i64, tpu.core_type = #tpu.core_type<tc>, window_params = [{transform_indices = @transform_0, window_bounds = array<i64: 256, 256>}, {pipeline_mode = #tpu.pipeline_mode<synchronous>, transform_indices = @transform_1, window_bounds = array<i64: 256, 128>}, {pipeline_mode = #tpu.pipeline_mode<synchronous>, transform_indices = @transform_2, window_bounds = array<i64: 128, 256>}, {pipeline_mode = #tpu.pipeline_mode<synchronous>, transform_indices = @transform_3, window_bounds = array<i64: 1, 256>}, {transform_indices = @transform_4, window_bounds = array<i64: 256, 256>}]} {
    %c0_i32 = arith.constant 0 : i32
    %0 = arith.cmpi eq, %arg1, %c0_i32 : i32
    %1 = arith.extui %0 : i1 to i32
    %c0_i32_0 = arith.constant 0 : i32
    %2 = arith.cmpi ne, %1, %c0_i32_0 : i32
    scf.if %2 {
      %cst_9 = arith.constant 0.000000e+00 : f32
      %15 = vector.broadcast %cst_9 : f32 to vector<256x128xf32>
      %c0_10 = arith.constant 0 : index
      %c0_11 = arith.constant 0 : index
      %16 = vector.load %arg7[%c0_10, %c0_11] : memref<256x128xf32, #tpu.memory_space<vmem>>, vector<256x128xf32>
      tpu.vector_store %arg7[%c0_10, %c0_11], %15 {strides = array<i32>} : memref<256x128xf32, #tpu.memory_space<vmem>>, vector<256x128xf32>,
    } else {
    }
    %c256_i32 = arith.constant 256 : i32
    %3 = arith.muli %arg1, %c256_i32 : i32
    %4 = tpu.assume_multiple %3, 256 : i32
    %5 = arith.index_cast %4 : i32 to index
    %c0 = arith.constant 0 : index
    %6 = vector.load %arg3[%5, %c0] : memref<256x128xf32, #tpu.memory_space<vmem>>, vector<256x128xf32>
    %c0_1 = arith.constant 0 : index
    %c0_2 = arith.constant 0 : index
    %7 = vector.load %arg7[%c0_1, %c0_2] : memref<256x128xf32, #tpu.memory_space<vmem>>, vector<256x128xf32>
    %c0_3 = arith.constant 0 : index
    %c0_4 = arith.constant 0 : index
    %8 = vector.load %arg2[%c0_3, %c0_4] : memref<256x256xf32, #tpu.memory_space<vmem>>, vector<256x256xf32>
    %cst = arith.constant dense<0.000000e+00> : vector<256x128xf32>
    %9 = tpu.matmul %8, %6, %cst {dimension_numbers = #tpu.dot_dimension_numbers<[1], [0], [0], [1], [0, 0, 1, 1], [], []>} : vector<256x256xf32>, vector<256x128xf32>, vector<256x128xf32> -> vector<256x128xf32>
    %10 = arith.addf %7, %9 : vector<256x128xf32>
    %c0_5 = arith.constant 0 : index
    %c0_6 = arith.constant 0 : index
    %11 = vector.load %arg7[%c0_5, %c0_6] : memref<256x128xf32, #tpu.memory_space<vmem>>, vector<256x128xf32>
    tpu.vector_store %arg7[%c0_5, %c0_6], %10 {strides = array<i32>} : memref<256x128xf32, #tpu.memory_space<vmem>>, vector<256x128xf32>,
    %c0_i32_7 = arith.constant 0 : i32
    %12 = arith.cmpi eq, %arg1, %c0_i32_7 : i32
    %13 = arith.extui %12 : i1 to i32
    %c0_i32_8 = arith.constant 0 : i32
    %14 = arith.cmpi ne, %13, %c0_i32_8 : i32
    scf.if %14 {
      %c0_9 = arith.constant 0 : index
      %c0_10 = arith.constant 0 : index
      %15 = vector.load %arg7[%c0_9, %c0_10] : memref<256x128xf32, #tpu.memory_space<vmem>>, vector<256x128xf32>
      %c0_11 = arith.constant 0 : index
      %c0_12 = arith.constant 0 : index
      %16 = vector.load %arg4[%c0_11, %c0_12] : memref<128x256xf32, #tpu.memory_space<vmem>>, vector<128x256xf32>
      %cst_13 = arith.constant dense<0.000000e+00> : vector<256x256xf32>
      %17 = tpu.matmul %15, %16, %cst_13 {dimension_numbers = #tpu.dot_dimension_numbers<[1], [0], [0], [1], [0, 0, 1, 1], [], []>} : vector<256x128xf32>, vector<128x256xf32>, vector<256x256xf32> -> vector<256x256xf32>
      %c0_14 = arith.constant 0 : index
      %c0_15 = arith.constant 0 : index
      %18 = vector.load %arg5[%c0_14, %c0_15] : memref<1x256xf32, #tpu.memory_space<vmem>>, vector<1x256xf32>
      %19 = vector.broadcast %18 : vector<1x256xf32> to vector<256x256xf32>
      %20 = arith.addf %17, %19 : vector<256x256xf32>
      %c0_16 = arith.constant 0 : index
      %c0_17 = arith.constant 0 : index
      %21 = vector.load %arg6[%c0_16, %c0_17] : memref<256x256xf32, #tpu.memory_space<vmem>>, vector<256x256xf32>
      tpu.vector_store %arg6[%c0_16, %c0_17], %20 {strides = array<i32>} : memref<256x256xf32, #tpu.memory_space<vmem>>, vector<256x256xf32>,
    } else {
    }
    return
  }
  func.func @transform_0(%arg0: i32, %arg1: i32) -> (i32, i32) {
    %c0_i32 = arith.constant 0 : i32
    return %arg0, %arg1 : i32, i32
  }
  func.func @transform_1(%arg0: i32, %arg1: i32) -> (i32, i32) {
    %c0_i32 = arith.constant 0 : i32
    %c0_i32_0 = arith.constant 0 : i32
    %c0_i32_1 = arith.constant 0 : i32
    return %c0_i32, %c0_i32_0 : i32, i32
  }
  func.func @transform_2(%arg0: i32, %arg1: i32) -> (i32, i32) {
    %c0_i32 = arith.constant 0 : i32
    %c0_i32_0 = arith.constant 0 : i32
    %c0_i32_1 = arith.constant 0 : i32
    return %c0_i32, %c0_i32_0 : i32, i32
  }
  func.func @transform_3(%arg0: i32, %arg1: i32) -> (i32, i32) {
    %c0_i32 = arith.constant 0 : i32
    %c0_i32_0 = arith.constant 0 : i32
    %c0_i32_1 = arith.constant 0 : i32
    return %c0_i32, %c0_i32_0 : i32, i32
  }
  func.func @transform_4(%arg0: i32, %arg1: i32) -> (i32, i32) {
    %c0_i32 = arith.constant 0 : i32
    %c0_i32_0 = arith.constant 0 : i32
    return %arg0, %c0_i32 : i32, i32
  }
}

</mosaic_0001>

<llo_original>
// kernel: tpu_custom_call.1
$region0: #{tpu_custom_call.1}
  #allocation0 [shape = 'u32[]', space=smem, size = 0x4, offset = 0x4, fixed_abs, tag = 'smem constant byte address 0x4 - core index']
  #allocation1 [shape = 'u32[144,128]{1,0:T(1,128)}', space=vmem, size = 0x12000, scoped, tag = 'internal scratch']
  #allocation2 [shape = 'f32[256,128]{1,0:T(8,128)}', space=vmem, size = 0x20000, scoped, tag = 'scratch operand']
  %s0 = inlined_call_operand.hbm [shape: f32[256,256], index: 0, kind: input, shape index: {}]
  %s1 = inlined_call_operand.hbm [shape: f32[256,128], index: 1, kind: input, shape index: {}]
  %s2 = inlined_call_operand.hbm [shape: f32[128,256], index: 2, kind: input, shape index: {}]
  %s3 = inlined_call_operand.vmem [shape: f32[1,256], index: 3, kind: input, shape index: {}]
  %s4 = inlined_call_operand.hbm [shape: f32[256,256], index: 4, kind: output, shape index: {}]
  %s5 = sld [smem:[#allocation0]]
  $region46: #{tpu_custom_call.1} parent=0
    _
  %s7 = ssub.s32 1, %s5
  %s8 = scalar_select 0, %s7, %s5
  $region1: #{tpu_custom_call.1} parent=0
    #allocation3 [shape = 'u8[262144]{0}', space=vmem, size = 0x40000, scoped, tag = 'input window, operand 0, single buffered']
    #allocation4 [shape = 's32[1]{0}', space=sflag, size = 0x4, scoped, tag = 'scoped memory for tpu_custom_call.1']
    #allocation5 [shape = 's32[1]{0}', space=sflag, size = 0x4, scoped, tag = 'scoped memory for tpu_custom_call.1']
    #allocation6 [shape = 'u8[131072]{0}', space=vmem, size = 0x20000, scoped, tag = 'input window, operand 1, single buffered']
    #allocation7 [shape = 's32[1]{0}', space=sflag, size = 0x4, scoped, tag = 'scoped memory for tpu_custom_call.1']
    #allocation8 [shape = 'u8[131072]{0}', space=vmem, size = 0x20000, scoped, tag = 'input window, operand 2, single buffered']
    #allocation9 [shape = 'u8[262144]{0}', space=vmem, size = 0x40000, scoped, tag = 'output window, operand 0, single buffered']
    %9 = vsyncpa [#allocation4], 0
    %10 = vsyncpa [#allocation7], 0
    %11 = vsyncpa [#allocation5], 0
    // Predicated region
    $region2: #{tpu_custom_call.1} parent=1 // pred_check
      _
    $region3: #{tpu_custom_call.1} parent=1 // pred_check_branch
      %13 = sbr.rel (0) target = $region5
    $region4: #{tpu_custom_call.1} parent=1 // pred_region
      %s15 = ssub.s32 8192, 8192
      %16 = vsyncadd [#allocation4], %s15
      %s17 = sshll.u32 [#allocation3], 4
      %s18 = int_to_ptr.vmem [resolvable:$true] %s17
      %23 = dma.hbm_to_vmem [thread:$0]  %s0, 8192, %s18, [#allocation4], 256, 256, 16
    $region5: #{tpu_custom_call.1} parent=1 // pred_fallthru
      _
    // Predicated region
    $region6: #{tpu_custom_call.1} parent=1 // pred_check
      _
    $region7: #{tpu_custom_call.1} parent=1 // pred_check_branch
      %25 = sbr.rel (0) target = $region9
    $region8: #{tpu_custom_call.1} parent=1 // pred_region
      %s27 = ssub.s32 4096, 4096
      %28 = vsyncadd [#allocation7], %s27
      %s29 = sshll.u32 [#allocation6], 4
      %s30 = int_to_ptr.vmem [resolvable:$true] %s29
      %35 = dma.hbm_to_vmem [thread:$0]  %s1, 4096, %s30, [#allocation7], 128, 128, 8
    $region9: #{tpu_custom_call.1} parent=1 // pred_fallthru
      _
    // Predicated region
    $region10: #{tpu_custom_call.1} parent=1 // pred_check
      _
    $region11: #{tpu_custom_call.1} parent=1 // pred_check_branch
      %37 = sbr.rel (0) target = $region13
    $region12: #{tpu_custom_call.1} parent=1 // pred_region
      %s39 = ssub.s32 4096, 4096
      %40 = vsyncadd [#allocation7], %s39
      %s41 = sshll.u32 [#allocation8], 4
      %s42 = int_to_ptr.vmem [resolvable:$true] %s41
      %47 = dma.hbm_to_vmem [thread:$0]  %s2, 4096, %s42, [#allocation7], 256, 256, 16
    $region13: #{tpu_custom_call.1} parent=1 // pred_fallthru
      _
    // Predicated region
    $region14: #{tpu_custom_call.1} parent=1 // pred_check
      _
    $region15: #{tpu_custom_call.1} parent=1 // pred_check_branch
      %49 = sbr.rel (0) target = $region17
    $region16: #{tpu_custom_call.1} parent=1 // pred_region
      _
    $region17: #{tpu_custom_call.1} parent=1 // pred_fallthru
      _
    // Predicated region
    $region18: #{tpu_custom_call.1} parent=1 // pred_check
      _
    $region19: #{tpu_custom_call.1} parent=1 // pred_check_branch
      %51 = sbr.rel (0) target = $region21
    $region20: #{tpu_custom_call.1} parent=1 // pred_region
      %52 = dma.done [#allocation4], 8192
    $region21: #{tpu_custom_call.1} parent=1 // pred_fallthru
      _
    // Predicated region
    $region22: #{tpu_custom_call.1} parent=1 // pred_check
      _
    $region23: #{tpu_custom_call.1} parent=1 // pred_check_branch
      %54 = sbr.rel (0) target = $region25
    $region24: #{tpu_custom_call.1} parent=1 // pred_region
      %55 = dma.done [#allocation7], 4096
    $region25: #{tpu_custom_call.1} parent=1 // pred_fallthru
      _
    // Predicated region
    $region26: #{tpu_custom_call.1} parent=1 // pred_check
      _
    $region27: #{tpu_custom_call.1} parent=1 // pred_check_branch
      %57 = sbr.rel (0) target = $region29
    $region28: #{tpu_custom_call.1} parent=1 // pred_region
      %58 = dma.done [#allocation7], 4096
    $region29: #{tpu_custom_call.1} parent=1 // pred_fallthru
      _
    %p59 = scmp.eq.s32.totalorder 0, 0
    // Predicated region
    $region30: #{tpu_custom_call.1} parent=1 // pred_check
      %p60 = pneg %p59
    $region31: #{tpu_custom_call.1} parent=1 // pred_check_branch
      %62 = sbr.rel (%p60) target = $region33
    $region32: #{tpu_custom_call.1} parent=1 // pred_region
      %63 = vst [vmem:[#allocation2] sm:$0xff] 0.0
      %64 = vst [vmem:[#allocation2 + $0x8] sm:$0xff] 0.0
      %65 = vst [vmem:[#allocation2 + $0x10] sm:$0xff] 0.0
      %66 = vst [vmem:[#allocation2 + $0x18] sm:$0xff] 0.0
      %67 = vst [vmem:[#allocation2 + $0x20] sm:$0xff] 0.0
      %68 = vst [vmem:[#allocation2 + $0x28] sm:$0xff] 0.0
      %69 = vst [vmem:[#allocation2 + $0x30] sm:$0xff] 0.0
      %70 = vst [vmem:[#allocation2 + $0x38] sm:$0xff] 0.0
      %71 = vst [vmem:[#allocation2 + $0x40] sm:$0xff] 0.0
      %72 = vst [vmem:[#allocation2 + $0x48] sm:$0xff] 0.0
      %73 = vst [vmem:[#allocation2 + $0x50] sm:$0xff] 0.0
      %74 = vst [vmem:[#allocation2 + $0x58] sm:$0xff] 0.0
      %75 = vst [vmem:[#allocation2 + $0x60] sm:$0xff] 0.0
      %76 = vst [vmem:[#allocation2 + $0x68] sm:$0xff] 0.0
      %77 = vst [vmem:[#allocation2 + $0x70] sm:$0xff] 0.0
      %78 = vst [vmem:[#allocation2 + $0x78] sm:$0xff] 0.0
      %79 = vst [vmem:[#allocation2 + $0x80] sm:$0xff] 0.0
      %80 = vst [vmem:[#allocation2 + $0x88] sm:$0xff] 0.0
      %81 = vst [vmem:[#allocation2 + $0x90] sm:$0xff] 0.0
      %82 = vst [vmem:[#allocation2 + $0x98] sm:$0xff] 0.0
      %83 = vst [vmem:[#allocation2 + $0xa0] sm:$0xff] 0.0
      %84 = vst [vmem:[#allocation2 + $0xa8] sm:$0xff] 0.0
      %85 = vst [vmem:[#allocation2 + $0xb0] sm:$0xff] 0.0
      %86 = vst [vmem:[#allocation2 + $0xb8] sm:$0xff] 0.0
      %87 = vst [vmem:[#allocation2 + $0xc0] sm:$0xff] 0.0
      %88 = vst [vmem:[#allocation2 + $0xc8] sm:$0xff] 0.0
      %89 = vst [vmem:[#allocation2 + $0xd0] sm:$0xff] 0.0
      %90 = vst [vmem:[#allocation2 + $0xd8] sm:$0xff] 0.0
      %91 = vst [vmem:[#allocation2 + $0xe0] sm:$0xff] 0.0
      %92 = vst [vmem:[#allocation2 + $0xe8] sm:$0xff] 0.0
      %93 = vst [vmem:[#allocation2 + $0xf0] sm:$0xff] 0.0
      %94 = vst [vmem:[#allocation2 + $0xf8] sm:$0xff] 0.0
    $region33: #{tpu_custom_call.1} parent=1 // pred_fallthru
      _
    %s95 = smul.u32 0, 256
    %s96 = scalar_lea.vmem [#allocation6], %s95
    %v97 = vld [vmem:[%s96] sm:$0xff]
    %v98 = vld [vmem:[%s96 + $0x8] sm:$0xff]
    %v99 = vld [vmem:[%s96 + $0x10] sm:$0xff]
    %v100 = vld [vmem:[%s96 + $0x18] sm:$0xff]
    %v101 = vld [vmem:[%s96 + $0x20] sm:$0xff]
    %v102 = vld [vmem:[%s96 + $0x28] sm:$0xff]
    %v103 = vld [vmem:[%s96 + $0x30] sm:$0xff]
    %v104 = vld [vmem:[%s96 + $0x38] sm:$0xff]
    %v105 = vld [vmem:[%s96 + $0x40] sm:$0xff]
    %v106 = vld [vmem:[%s96 + $0x48] sm:$0xff]
    %v107 = vld [vmem:[%s96 + $0x50] sm:$0xff]
    %v108 = vld [vmem:[%s96 + $0x58] sm:$0xff]
    %v109 = vld [vmem:[%s96 + $0x60] sm:$0xff]
    %v110 = vld [vmem:[%s96 + $0x68] sm:$0xff]
    %v111 = vld [vmem:[%s96 + $0x70] sm:$0xff]
    %v112 = vld [vmem:[%s96 + $0x78] sm:$0xff]
    %v113 = vld [vmem:[%s96 + $0x80] sm:$0xff]
    %v114 = vld [vmem:[%s96 + $0x88] sm:$0xff]
    %v115 = vld [vmem:[%s96 + $0x90] sm:$0xff]
    %v116 = vld [vmem:[%s96 + $0x98] sm:$0xff]
    %v117 = vld [vmem:[%s96 + $0xa0] sm:$0xff]
    %v118 = vld [vmem:[%s96 + $0xa8] sm:$0xff]
    %v119 = vld [vmem:[%s96 + $0xb0] sm:$0xff]
    %v120 = vld [vmem:[%s96 + $0xb8] sm:$0xff]
    %v121 = vld [vmem:[%s96 + $0xc0] sm:$0xff]
    %v122 = vld [vmem:[%s96 + $0xc8] sm:$0xff]
    %v123 = vld [vmem:[%s96 + $0xd0] sm:$0xff]
    %v124 = vld [vmem:[%s96 + $0xd8] sm:$0xff]
    %v125 = vld [vmem:[%s96 + $0xe0] sm:$0xff]
    %v126 = vld [vmem:[%s96 + $0xe8] sm:$0xff]
    %v127 = vld [vmem:[%s96 + $0xf0] sm:$0xff]
    %v128 = vld [vmem:[%s96 + $0xf8] sm:$0xff]
    %v129 = vld [vmem:[#allocation2] sm:$0xff]
    %v130 = vld [vmem:[#allocation2 + $0x8] sm:$0xff]
    %v131 = vld [vmem:[#allocation2 + $0x10] sm:$0xff]
    %v132 = vld [vmem:[#allocation2 + $0x18] sm:$0xff]
    %v133 = vld [vmem:[#allocation2 + $0x20] sm:$0xff]
    %v134 = vld [vmem:[#allocation2 + $0x28] sm:$0xff]
    %v135 = vld [vmem:[#allocation2 + $0x30] sm:$0xff]
    %v136 = vld [vmem:[#allocation2 + $0x38] sm:$0xff]
    %v137 = vld [vmem:[#allocation2 + $0x40] sm:$0xff]
    %v138 = vld [vmem:[#allocation2 + $0x48] sm:$0xff]
    %v139 = vld [vmem:[#allocation2 + $0x50] sm:$0xff]
    %v140 = vld [vmem:[#allocation2 + $0x58] sm:$0xff]
    %v141 = vld [vmem:[#allocation2 + $0x60] sm:$0xff]
    %v142 = vld [vmem:[#allocation2 + $0x68] sm:$0xff]
    %v143 = vld [vmem:[#allocation2 + $0x70] sm:$0xff]
    %v144 = vld [vmem:[#allocation2 + $0x78] sm:$0xff]
    %v145 = vld [vmem:[#allocation2 + $0x80] sm:$0xff]
    %v146 = vld [vmem:[#allocation2 + $0x88] sm:$0xff]
    %v147 = vld [vmem:[#allocation2 + $0x90] sm:$0xff]
    %v148 = vld [vmem:[#allocation2 + $0x98] sm:$0xff]
    %v149 = vld [vmem:[#allocation2 + $0xa0] sm:$0xff]
    %v150 = vld [vmem:[#allocation2 + $0xa8] sm:$0xff]
    %v151 = vld [vmem:[#allocation2 + $0xb0] sm:$0xff]
    %v152 = vld [vmem:[#allocation2 + $0xb8] sm:$0xff]
    %v153 = vld [vmem:[#allocation2 + $0xc0] sm:$0xff]
    %v154 = vld [vmem:[#allocation2 + $0xc8] sm:$0xff]
    %v155 = vld [vmem:[#allocation2 + $0xd0] sm:$0xff]
    %v156 = vld [vmem:[#allocation2 + $0xd8] sm:$0xff]
    %v157 = vld [vmem:[#allocation2 + $0xe0] sm:$0xff]
    %v158 = vld [vmem:[#allocation2 + $0xe8] sm:$0xff]
    %v159 = vld [vmem:[#allocation2 + $0xf0] sm:$0xff]
    %v160 = vld [vmem:[#allocation2 + $0xf8] sm:$0xff]
    %v161 = vld [vmem:[#allocation3] sm:$0xff]
    %v162 = vld [vmem:[#allocation3 + $0x8] sm:$0xff]
    %v163 = vld [vmem:[#allocation3 + $0x10] sm:$0xff]
    %v164 = vld [vmem:[#allocation3 + $0x18] sm:$0xff]
    %v165 = vld [vmem:[#allocation3 + $0x20] sm:$0xff]
    %v166 = vld [vmem:[#allocation3 + $0x28] sm:$0xff]
    %v167 = vld [vmem:[#allocation3 + $0x30] sm:$0xff]
    %v168 = vld [vmem:[#allocation3 + $0x38] sm:$0xff]
    %v169 = vld [vmem:[#allocation3 + $0x40] sm:$0xff]
    %v170 = vld [vmem:[#allocation3 + $0x48] sm:$0xff]
    %v171 = vld [vmem:[#allocation3 + $0x50] sm:$0xff]
    %v172 = vld [vmem:[#allocation3 + $0x58] sm:$0xff]
    %v173 = vld [vmem:[#allocation3 + $0x60] sm:$0xff]
    %v174 = vld [vmem:[#allocation3 + $0x68] sm:$0xff]
    %v175 = vld [vmem:[#allocation3 + $0x70] sm:$0xff]
    %v176 = vld [vmem:[#allocation3 + $0x78] sm:$0xff]
    %v177 = vld [vmem:[#allocation3 + $0x80] sm:$0xff]
    %v178 = vld [vmem:[#allocation3 + $0x88] sm:$0xff]
    %v179 = vld [vmem:[#allocation3 + $0x90] sm:$0xff]
    %v180 = vld [vmem:[#allocation3 + $0x98] sm:$0xff]
    %v181 = vld [vmem:[#allocation3 + $0xa0] sm:$0xff]
    %v182 = vld [vmem:[#allocation3 + $0xa8] sm:$0xff]
    %v183 = vld [vmem:[#allocation3 + $0xb0] sm:$0xff]
    %v184 = vld [vmem:[#allocation3 + $0xb8] sm:$0xff]
    %v185 = vld [vmem:[#allocation3 + $0xc0] sm:$0xff]
    %v186 = vld [vmem:[#allocation3 + $0xc8] sm:$0xff]
    %v187 = vld [vmem:[#allocation3 + $0xd0] sm:$0xff]
    %v188 = vld [vmem:[#allocation3 + $0xd8] sm:$0xff]
    %v189 = vld [vmem:[#allocation3 + $0xe0] sm:$0xff]
    %v190 = vld [vmem:[#allocation3 + $0xe8] sm:$0xff]
    %v191 = vld [vmem:[#allocation3 + $0xf0] sm:$0xff]
    %v192 = vld [vmem:[#allocation3 + $0xf8] sm:$0xff]
    %v193 = vld [vmem:[#allocation3 + $0x100] sm:$0xff]
    %v194 = vld [vmem:[#allocation3 + $0x108] sm:$0xff]
    %v195 = vld [vmem:[#allocation3 + $0x110] sm:$0xff]
    %v196 = vld [vmem:[#allocation3 + $0x118] sm:$0xff]
    %v197 = vld [vmem:[#allocation3 + $0x120] sm:$0xff]
    %v198 = vld [vmem:[#allocation3 + $0x128] sm:$0xff]
    %v199 = vld [vmem:[#allocation3 + $0x130] sm:$0xff]
    %v200 = vld [vmem:[#allocation3 + $0x138] sm:$0xff]
    %v201 = vld [vmem:[#allocation3 + $0x140] sm:$0xff]
    %v202 = vld [vmem:[#allocation3 + $0x148] sm:$0xff]
    %v203 = vld [vmem:[#allocation3 + $0x150] sm:$0xff]
    %v204 = vld [vmem:[#allocation3 + $0x158] sm:$0xff]
    %v205 = vld [vmem:[#allocation3 + $0x160] sm:$0xff]
    %v206 = vld [vmem:[#allocation3 + $0x168] sm:$0xff]
    %v207 = vld [vmem:[#allocation3 + $0x170] sm:$0xff]
    %v208 = vld [vmem:[#allocation3 + $0x178] sm:$0xff]
    %v209 = vld [vmem:[#allocation3 + $0x180] sm:$0xff]
    %v210 = vld [vmem:[#allocation3 + $0x188] sm:$0xff]
    %v211 = vld [vmem:[#allocation3 + $0x190] sm:$0xff]
    %v212 = vld [vmem:[#allocation3 + $0x198] sm:$0xff]
    %v213 = vld [vmem:[#allocation3 + $0x1a0] sm:$0xff]
    %v214 = vld [vmem:[#allocation3 + $0x1a8] sm:$0xff]
    %v215 = vld [vmem:[#allocation3 + $0x1b0] sm:$0xff]
    %v216 = vld [vmem:[#allocation3 + $0x1b8] sm:$0xff]
    %v217 = vld [vmem:[#allocation3 + $0x1c0] sm:$0xff]
    %v218 = vld [vmem:[#allocation3 + $0x1c8] sm:$0xff]
    %v219 = vld [vmem:[#allocation3 + $0x1d0] sm:$0xff]
    %v220 = vld [vmem:[#allocation3 + $0x1d8] sm:$0xff]
    %v221 = vld [vmem:[#allocation3 + $0x1e0] sm:$0xff]
    %v222 = vld [vmem:[#allocation3 + $0x1e8] sm:$0xff]
    %v223 = vld [vmem:[#allocation3 + $0x1f0] sm:$0xff]
    %v224 = vld [vmem:[#allocation3 + $0x1f8] sm:$0xff]
    %225 = vmatprep.subr.mxu0 0.0
    %226 = vmatpush1.msra.mxu0 %v97
    %227 = vmatprep.subr.mxu0 0.0
    %228 = vmatpush1.msra.mxu0 %v98
    %229 = vmatprep.subr.mxu0 0.0
    %230 = vmatpush1.msra.mxu0 %v99
    %231 = vmatprep.subr.mxu0 0.0
    %232 = vmatpush1.msra.mxu0 %v100
    %233 = vmatprep.subr.mxu0 0.0
    %234 = vmatpush1.msra.mxu0 %v101
    %235 = vmatprep.subr.mxu0 0.0
    %236 = vmatpush1.msra.mxu0 %v102
    %237 = vmatprep.subr.mxu0 0.0
    %238 = vmatpush1.msra.mxu0 %v103
    %239 = vmatprep.subr.mxu0 0.0
    %240 = vmatpush1.msra.mxu0 %v104
    %241 = vmatprep.subr.mxu0 0.0
    %242 = vmatpush1.msra.mxu0 %v105
    %243 = vmatprep.subr.mxu0 0.0
    %244 = vmatpush1.msra.mxu0 %v106
    %245 = vmatprep.subr.mxu0 0.0
    %246 = vmatpush1.msra.mxu0 %v107
    %247 = vmatprep.subr.mxu0 0.0
    %248 = vmatpush1.msra.mxu0 %v108
    %249 = vmatprep.subr.mxu0 0.0
    %250 = vmatpush1.msra.mxu0 %v109
    %251 = vmatprep.subr.mxu0 0.0
    %252 = vmatpush1.msra.mxu0 %v110
    %253 = vmatprep.subr.mxu0 0.0
    %254 = vmatpush1.msra.mxu0 %v111
    %255 = vmatprep.subr.mxu0 0.0
    %256 = vmatpush1.msra.mxu0 %v112
    %257 = vmatprep.subr.mxu0 0.0
    %258 = vmatpush1.msra.mxu0 %v113
    %259 = vmatprep.subr.mxu0 0.0
    %260 = vmatpush1.msra.mxu0 %v114
    %261 = vmatprep.subr.mxu0 0.0
    %262 = vmatpush1.msra.mxu0 %v115
    %263 = vmatprep.subr.mxu0 0.0
    %264 = vmatpush1.msra.mxu0 %v116
    %265 = vmatprep.subr.mxu0 0.0
    %266 = vmatpush1.msra.mxu0 %v117
    %267 = vmatprep.subr.mxu0 0.0
    %268 = vmatpush1.msra.mxu0 %v118
    %269 = vmatprep.subr.mxu0 0.0
    %270 = vmatpush1.msra.mxu0 %v119
    %271 = vmatprep.subr.mxu0 0.0
    %272 = vmatpush1.msra.mxu0 %v120
    %273 = vmatprep.subr.mxu0 0.0
    %274 = vmatpush1.msra.mxu0 %v121
    %275 = vmatprep.subr.mxu0 0.0
    %276 = vmatpush1.msra.mxu0 %v122
    %277 = vmatprep.subr.mxu0 0.0
    %278 = vmatpush1.msra.mxu0 %v123
    %279 = vmatprep.subr.mxu0 0.0
    %280 = vmatpush1.msra.mxu0 %v124
    %281 = vmatprep.subr.mxu0 0.0
    %282 = vmatpush1.msra.mxu0 %v125
    %283 = vmatprep.subr.mxu0 0.0
    %284 = vmatpush1.msra.mxu0 %v126
    %285 = vmatprep.subr.mxu0 0.0
    %286 = vmatpush1.msra.mxu0 %v127
    %287 = vmatprep.subr.mxu0 0.0
    %288 = vmatpush1.msra.mxu0 %v128
    %289 = vmatprep.mubr.f32.mxu0 %v162
    %290 = vmatmul.mubr.f32.gmra.mrb[0].mxu0 %v161
    %v291 = vpop.f32.mrb[0].mxu0
    %v292 = vadd.f32 0.0, %v291
    %v293 = vpop.f32.mrb[0].mxu0
    %294 = vmatprep.mubr.f32.mxu0 %v164
    %295 = vmatmul.mubr.f32.gmra.mrb[0].mxu0 %v163
    %v296 = vpop.f32.mrb[0].mxu0
    %v297 = vadd.f32 0.0, %v296
    %v298 = vpop.f32.mrb[0].mxu0
    %299 = vmatprep.mubr.f32.mxu0 %v166
    %300 = vmatmul.mubr.f32.gmra.mrb[0].mxu0 %v165
    %v301 = vpop.f32.mrb[0].mxu0
    %v302 = vadd.f32 0.0, %v301
    %v303 = vpop.f32.mrb[0].mxu0
    %304 = vmatprep.mubr.f32.mxu0 %v168
    %305 = vmatmul.mubr.f32.gmra.mrb[0].mxu0 %v167
    %v306 = vpop.f32.mrb[0].mxu0
    %v307 = vadd.f32 0.0, %v306
    %v308 = vpop.f32.mrb[0].mxu0
    %309 = vmatprep.mubr.f32.mxu0 %v170
    %310 = vmatmul.mubr.f32.gmra.mrb[0].mxu0 %v169
    %v311 = vpop.f32.mrb[0].mxu0
    %v312 = vadd.f32 0.0, %v311
    %v313 = vpop.f32.mrb[0].mxu0
    %314 = vmatprep.mubr.f32.mxu0 %v172
    %315 = vmatmul.mubr.f32.gmra.mrb[0].mxu0 %v171
    %v316 = vpop.f32.mrb[0].mxu0
    %v317 = vadd.f32 0.0, %v316
    %v318 = vpop.f32.mrb[0].mxu0
    %319 = vmatprep.mubr.f32.mxu0 %v174
    %320 = vmatmul.mubr.f32.gmra.mrb[0].mxu0 %v173
    %v321 = vpop.f32.mrb[0].mxu0
    %v322 = vadd.f32 0.0, %v321
    %v323 = vpop.f32.mrb[0].mxu0
    %324 = vmatprep.mubr.f32.mxu0 %v176
    %325 = vmatmul.mubr.f32.gmra.mrb[0].mxu0 %v175
    %v326 = vpop.f32.mrb[0].mxu0
    %v327 = vadd.f32 0.0, %v326
    %v328 = vpop.f32.mrb[0].mxu0
    %329 = vmatprep.mubr.f32.mxu0 %v178
    %330 = vmatmul.mubr.f32.gmra.mrb[0].mxu0 %v177
    %v331 = vpop.f32.mrb[0].mxu0
    %v332 = vadd.f32 0.0, %v331
    %v333 = vpop.f32.mrb[0].mxu0
    %334 = vmatprep.mubr.f32.mxu0 %v180
    %335 = vmatmul.mubr.f32.gmra.mrb[0].mxu0 %v179
    %v336 = vpop.f32.mrb[0].mxu0
    %v337 = vadd.f32 0.0, %v336
    %v338 = vpop.f32.mrb[0].mxu0
    %339 = vmatprep.mubr.f32.mxu0 %v182
    %340 = vmatmul.mubr.f32.gmra.mrb[0].mxu0 %v181
    %v341 = vpop.f32.mrb[0].mxu0
    %v342 = vadd.f32 0.0, %v341
    %v343 = vpop.f32.mrb[0].mxu0
    %344 = vmatprep.mubr.f32.mxu0 %v184
    %345 = vmatmul.mubr.f32.gmra.mrb[0].mxu0 %v183
    %v346 = vpop.f32.mrb[0].mxu0
    %v347 = vadd.f32 0.0, %v346
    %v348 = vpop.f32.mrb[0].mxu0
    %349 = vmatprep.mubr.f32.mxu0 %v186
    %350 = vmatmul.mubr.f32.gmra.mrb[0].mxu0 %v185
    %v351 = vpop.f32.mrb[0].mxu0
    %v352 = vadd.f32 0.0, %v351
    %v353 = vpop.f32.mrb[0].mxu0
    %354 = vmatprep.mubr.f32.mxu0 %v188
    %355 = vmatmul.mubr.f32.gmra.mrb[0].mxu0 %v187
    %v356 = vpop.f32.mrb[0].mxu0
    %v357 = vadd.f32 0.0, %v356
    %v358 = vpop.f32.mrb[0].mxu0
    %359 = vmatprep.mubr.f32.mxu0 %v190
    %360 = vmatmul.mubr.f32.gmra.mrb[0].mxu0 %v189
    %v361 = vpop.f32.mrb[0].mxu0
    %v362 = vadd.f32 0.0, %v361
    %v363 = vpop.f32.mrb[0].mxu0
    %364 = vmatprep.mubr.f32.mxu0 %v192
    %365 = vmatmul.mubr.f32.gmra.mrb[0].mxu0 %v191
    %v366 = vpop.f32.mrb[0].mxu0
    %v367 = vadd.f32 0.0, %v366
    %v368 = vpop.f32.mrb[0].mxu0
    %369 = vmatprep.mubr.f32.mxu0 %v194
    %370 = vmatmul.mubr.f32.gmra.mrb[0].mxu0 %v193
    %v371 = vpop.f32.mrb[0].mxu0
    %v372 = vadd.f32 0.0, %v371
    %v373 = vpop.f32.mrb[0].mxu0
    %374 = vmatprep.mubr.f32.mxu0 %v196
    %375 = vmatmul.mubr.f32.gmra.mrb[0].mxu0 %v195
    %v376 = vpop.f32.mrb[0].mxu0
    %v377 = vadd.f32 0.0, %v376
    %v378 = vpop.f32.mrb[0].mxu0
    %379 = vmatprep.mubr.f32.mxu0 %v198
    %380 = vmatmul.mubr.f32.gmra.mrb[0].mxu0 %v197
    %v381 = vpop.f32.mrb[0].mxu0
    %v382 = vadd.f32 0.0, %v381
    %v383 = vpop.f32.mrb[0].mxu0
    %384 = vmatprep.mubr.f32.mxu0 %v200
    %385 = vmatmul.mubr.f32.gmra.mrb[0].mxu0 %v199
    %v386 = vpop.f32.mrb[0].mxu0
    %v387 = vadd.f32 0.0, %v386
    %v388 = vpop.f32.mrb[0].mxu0
    %389 = vmatprep.mubr.f32.mxu0 %v202
    %390 = vmatmul.mubr.f32.gmra.mrb[0].mxu0 %v201
    %v391 = vpop.f32.mrb[0].mxu0
    %v392 = vadd.f32 0.0, %v391
    %v393 = vpop.f32.mrb[0].mxu0
    %394 = vmatprep.mubr.f32.mxu0 %v204
    %395 = vmatmul.mubr.f32.gmra.mrb[0].mxu0 %v203
    %v396 = vpop.f32.mrb[0].mxu0
    %v397 = vadd.f32 0.0, %v396
    %v398 = vpop.f32.mrb[0].mxu0
    %399 = vmatprep.mubr.f32.mxu0 %v206
    %400 = vmatmul.mubr.f32.gmra.mrb[0].mxu0 %v205
    %v401 = vpop.f32.mrb[0].mxu0
    %v402 = vadd.f32 0.0, %v401
    %v403 = vpop.f32.mrb[0].mxu0
    %404 = vmatprep.mubr.f32.mxu0 %v208
    %405 = vmatmul.mubr.f32.gmra.mrb[0].mxu0 %v207
    %v406 = vpop.f32.mrb[0].mxu0
    %v407 = vadd.f32 0.0, %v406
    %v408 = vpop.f32.mrb[0].mxu0
    %409 = vmatprep.mubr.f32.mxu0 %v210
    %410 = vmatmul.mubr.f32.gmra.mrb[0].mxu0 %v209
    %v411 = vpop.f32.mrb[0].mxu0
    %v412 = vadd.f32 0.0, %v411
    %v413 = vpop.f32.mrb[0].mxu0
    %414 = vmatprep.mubr.f32.mxu0 %v212
    %415 = vmatmul.mubr.f32.gmra.mrb[0].mxu0 %v211
    %v416 = vpop.f32.mrb[0].mxu0
    %v417 = vadd.f32 0.0, %v416
    %v418 = vpop.f32.mrb[0].mxu0
    %419 = vmatprep.mubr.f32.mxu0 %v214
    %420 = vmatmul.mubr.f32.gmra.mrb[0].mxu0 %v213
    %v421 = vpop.f32.mrb[0].mxu0
    %v422 = vadd.f32 0.0, %v421
    %v423 = vpop.f32.mrb[0].mxu0
    %424 = vmatprep.mubr.f32.mxu0 %v216
    %425 = vmatmul.mubr.f32.gmra.mrb[0].mxu0 %v215
    %v426 = vpop.f32.mrb[0].mxu0
    %v427 = vadd.f32 0.0, %v426
    %v428 = vpop.f32.mrb[0].mxu0
    %429 = vmatprep.mubr.f32.mxu0 %v218
    %430 = vmatmul.mubr.f32.gmra.mrb[0].mxu0 %v217
    %v431 = vpop.f32.mrb[0].mxu0
    %v432 = vadd.f32 0.0, %v431
    %v433 = vpop.f32.mrb[0].mxu0
    %434 = vmatprep.mubr.f32.mxu0 %v220
    %435 = vmatmul.mubr.f32.gmra.mrb[0].mxu0 %v219
    %v436 = vpop.f32.mrb[0].mxu0
    %v437 = vadd.f32 0.0, %v436
    %v438 = vpop.f32.mrb[0].mxu0
    %439 = vmatprep.mubr.f32.mxu0 %v222
    %440 = vmatmul.mubr.f32.gmra.mrb[0].mxu0 %v221
    %v441 = vpop.f32.mrb[0].mxu0
    %v442 = vadd.f32 0.0, %v441
    %v443 = vpop.f32.mrb[0].mxu0
    %444 = vmatprep.mubr.f32.mxu0 %v224
    %445 = vmatmul.mubr.f32.gmra.mrb[0].mxu0 %v223
    %v446 = vpop.f32.mrb[0].mxu0
    %v447 = vadd.f32 0.0, %v446
    %v448 = vpop.f32.mrb[0].mxu0
    %449 = vdwg.mxu0
    %v450 = vadd.f32 %v129, %v292
    %v451 = vadd.f32 %v130, %v297
    %v452 = vadd.f32 %v131, %v302
    %v453 = vadd.f32 %v132, %v307
    %v454 = vadd.f32 %v133, %v312
    %v455 = vadd.f32 %v134, %v317
    %v456 = vadd.f32 %v135, %v322
    %v457 = vadd.f32 %v136, %v327
    %v458 = vadd.f32 %v137, %v332
    %v459 = vadd.f32 %v138, %v337
    %v460 = vadd.f32 %v139, %v342
    %v461 = vadd.f32 %v140, %v347
    %v462 = vadd.f32 %v141, %v352
    %v463 = vadd.f32 %v142, %v357
    %v464 = vadd.f32 %v143, %v362
    %v465 = vadd.f32 %v144, %v367
    %v466 = vadd.f32 %v145, %v372
    %v467 = vadd.f32 %v146, %v377
    %v468 = vadd.f32 %v147, %v382
    %v469 = vadd.f32 %v148, %v387
    %v470 = vadd.f32 %v149, %v392
    %v471 = vadd.f32 %v150, %v397
    %v472 = vadd.f32 %v151, %v402
    %v473 = vadd.f32 %v152, %v407
    %v474 = vadd.f32 %v153, %v412
    %v475 = vadd.f32 %v154, %v417
    %v476 = vadd.f32 %v155, %v422
    %v477 = vadd.f32 %v156, %v427
    %v478 = vadd.f32 %v157, %v432
    %v479 = vadd.f32 %v158, %v437
    %v480 = vadd.f32 %v159, %v442
    %v481 = vadd.f32 %v160, %v447
    %482 = vst [vmem:[#allocation2] sm:$0xff] %v450
    %483 = vst [vmem:[#allocation2 + $0x8] sm:$0xff] %v451
    %484 = vst [vmem:[#allocation2 + $0x10] sm:$0xff] %v452
    %485 = vst [vmem:[#allocation2 + $0x18] sm:$0xff] %v453
    %486 = vst [vmem:[#allocation2 + $0x20] sm:$0xff] %v454
    %487 = vst [vmem:[#allocation2 + $0x28] sm:$0xff] %v455
    %488 = vst [vmem:[#allocation2 + $0x30] sm:$0xff] %v456
    %489 = vst [vmem:[#allocation2 + $0x38] sm:$0xff] %v457
    %490 = vst [vmem:[#allocation2 + $0x40] sm:$0xff] %v458
    %491 = vst [vmem:[#allocation2 + $0x48] sm:$0xff] %v459
    %492 = vst [vmem:[#allocation2 + $0x50] sm:$0xff] %v460
    %493 = vst [vmem:[#allocation2 + $0x58] sm:$0xff] %v461
    %494 = vst [vmem:[#allocation2 + $0x60] sm:$0xff] %v462
    %495 = vst [vmem:[#allocation2 + $0x68] sm:$0xff] %v463
    %496 = vst [vmem:[#allocation2 + $0x70] sm:$0xff] %v464
    %497 = vst [vmem:[#allocation2 + $0x78] sm:$0xff] %v465
    %498 = vst [vmem:[#allocation2 + $0x80] sm:$0xff] %v466
    %499 = vst [vmem:[#allocation2 + $0x88] sm:$0xff] %v467
    %500 = vst [vmem:[#allocation2 + $0x90] sm:$0xff] %v468
    %501 = vst [vmem:[#allocation2 + $0x98] sm:$0xff] %v469
    %502 = vst [vmem:[#allocation2 + $0xa0] sm:$0xff] %v470
    %503 = vst [vmem:[#allocation2 + $0xa8] sm:$0xff] %v471
    %504 = vst [vmem:[#allocation2 + $0xb0] sm:$0xff] %v472
    %505 = vst [vmem:[#allocation2 + $0xb8] sm:$0xff] %v473
    %506 = vst [vmem:[#allocation2 + $0xc0] sm:$0xff] %v474
    %507 = vst [vmem:[#allocation2 + $0xc8] sm:$0xff] %v475
    %508 = vst [vmem:[#allocation2 + $0xd0] sm:$0xff] %v476
    %509 = vst [vmem:[#allocation2 + $0xd8] sm:$0xff] %v477
    %510 = vst [vmem:[#allocation2 + $0xe0] sm:$0xff] %v478
    %511 = vst [vmem:[#allocation2 + $0xe8] sm:$0xff] %v479
    %512 = vst [vmem:[#allocation2 + $0xf0] sm:$0xff] %v480
    %513 = vst [vmem:[#allocation2 + $0xf8] sm:$0xff] %v481
    // Predicated region
    $region34: #{tpu_custom_call.1} parent=1 // pred_check
      %p514 = pneg %p59
    $region35: #{tpu_custom_call.1} parent=1 // pred_check_branch
      %516 = sbr.rel (%p514) target = $region37
    $region36: #{tpu_custom_call.1} parent=1 // pred_region
      %v517 = vld [vmem:[#allocation2] sm:$0xff]
      %v518 = vld [vmem:[#allocation2 + $0x8] sm:$0xff]
      %v519 = vld [vmem:[#allocation2 + $0x10] sm:$0xff]
      %v520 = vld [vmem:[#allocation2 + $0x18] sm:$0xff]
      %v521 = vld [vmem:[#allocation2 + $0x20] sm:$0xff]
      %v522 = vld [vmem:[#allocation2 + $0x28] sm:$0xff]
      %v523 = vld [vmem:[#allocation2 + $0x30] sm:$0xff]
      %v524 = vld [vmem:[#allocation2 + $0x38] sm:$0xff]
      %v525 = vld [vmem:[#allocation2 + $0x40] sm:$0xff]
      %v526 = vld [vmem:[#allocation2 + $0x48] sm:$0xff]
      %v527 = vld [vmem:[#allocation2 + $0x50] sm:$0xff]
      %v528 = vld [vmem:[#allocation2 + $0x58] sm:$0xff]
      %v529 = vld [vmem:[#allocation2 + $0x60] sm:$0xff]
      %v530 = vld [vmem:[#allocation2 + $0x68] sm:$0xff]
      %v531 = vld [vmem:[#allocation2 + $0x70] sm:$0xff]
      %v532 = vld [vmem:[#allocation2 + $0x78] sm:$0xff]
      %v533 = vld [vmem:[#allocation2 + $0x80] sm:$0xff]
      %v534 = vld [vmem:[#allocation2 + $0x88] sm:$0xff]
      %v535 = vld [vmem:[#allocation2 + $0x90] sm:$0xff]
      %v536 = vld [vmem:[#allocation2 + $0x98] sm:$0xff]
      %v537 = vld [vmem:[#allocation2 + $0xa0] sm:$0xff]
      %v538 = vld [vmem:[#allocation2 + $0xa8] sm:$0xff]
      %v539 = vld [vmem:[#allocation2 + $0xb0] sm:$0xff]
      %v540 = vld [vmem:[#allocation2 + $0xb8] sm:$0xff]
      %v541 = vld [vmem:[#allocation2 + $0xc0] sm:$0xff]
      %v542 = vld [vmem:[#allocation2 + $0xc8] sm:$0xff]
      %v543 = vld [vmem:[#allocation2 + $0xd0] sm:$0xff]
      %v544 = vld [vmem:[#allocation2 + $0xd8] sm:$0xff]
      %v545 = vld [vmem:[#allocation2 + $0xe0] sm:$0xff]
      %v546 = vld [vmem:[#allocation2 + $0xe8] sm:$0xff]
      %v547 = vld [vmem:[#allocation2 + $0xf0] sm:$0xff]
      %v548 = vld [vmem:[#allocation2 + $0xf8] sm:$0xff]
      %v549 = vld [vmem:[#allocation8] sm:$0xff]
      %v550 = vld [vmem:[#allocation8 + $0x8] sm:$0xff]
      %v551 = vld [vmem:[#allocation8 + $0x10] sm:$0xff]
      %v552 = vld [vmem:[#allocation8 + $0x18] sm:$0xff]
      %v553 = vld [vmem:[#allocation8 + $0x20] sm:$0xff]
      %v554 = vld [vmem:[#allocation8 + $0x28] sm:$0xff]
      %v555 = vld [vmem:[#allocation8 + $0x30] sm:$0xff]
      %v556 = vld [vmem:[#allocation8 + $0x38] sm:$0xff]
      %v557 = vld [vmem:[#allocation8 + $0x40] sm:$0xff]
      %v558 = vld [vmem:[#allocation8 + $0x48] sm:$0xff]
      %v559 = vld [vmem:[#allocation8 + $0x50] sm:$0xff]
      %v560 = vld [vmem:[#allocation8 + $0x58] sm:$0xff]
      %v561 = vld [vmem:[#allocation8 + $0x60] sm:$0xff]
      %v562 = vld [vmem:[#allocation8 + $0x68] sm:$0xff]
      %v563 = vld [vmem:[#allocation8 + $0x70] sm:$0xff]
      %v564 = vld [vmem:[#allocation8 + $0x78] sm:$0xff]
      %v565 = vld [vmem:[#allocation8 + $0x80] sm:$0xff]
      %v566 = vld [vmem:[#allocation8 + $0x88] sm:$0xff]
      %v567 = vld [vmem:[#allocation8 + $0x90] sm:$0xff]
      %v568 = vld [vmem:[#allocation8 + $0x98] sm:$0xff]
      %v569 = vld [vmem:[#allocation8 + $0xa0] sm:$0xff]
      %v570 = vld [vmem:[#allocation8 + $0xa8] sm:$0xff]
      %v571 = vld [vmem:[#allocation8 + $0xb0] sm:$0xff]
      %v572 = vld [vmem:[#allocation8 + $0xb8] sm:$0xff]
      %v573 = vld [vmem:[#allocation8 + $0xc0] sm:$0xff]
      %v574 = vld [vmem:[#allocation8 + $0xc8] sm:$0xff]
      %v575 = vld [vmem:[#allocation8 + $0xd0] sm:$0xff]
      %v576 = vld [vmem:[#allocation8 + $0xd8] sm:$0xff]
      %v577 = vld [vmem:[#allocation8 + $0xe0] sm:$0xff]
      %v578 = vld [vmem:[#allocation8 + $0xe8] sm:$0xff]
      %v579 = vld [vmem:[#allocation8 + $0xf0] sm:$0xff]
      %v580 = vld [vmem:[#allocation8 + $0xf8] sm:$0xff]
      %v581 = vld [vmem:[%s3] sm:$0x3]
      %v583 = vlaneseq
      %v584 = vshrl.u32 %v583, 7
      %v585 = vsub.s32 0, %v584
      %v586 = vrot.slane %v581, %v585
      %v587 = vlaneseq
      %v588 = vshrl.u32 %v587, 7
      %v589 = vsub.s32 1, %v588
      %v590 = vrot.slane %v581, %v589
      %593 = vmatprep.subr.mxu0 %v550
      %594 = vmatpush1.msra.mxu0 %v549
      %595 = vmatprep.subr.mxu0 %v552
      %596 = vmatpush1.msra.mxu0 %v551
      %597 = vmatprep.subr.mxu0 %v554
      %598 = vmatpush1.msra.mxu0 %v553
      %599 = vmatprep.subr.mxu0 %v556
      %600 = vmatpush1.msra.mxu0 %v555
      %601 = vmatprep.subr.mxu0 %v558
      %602 = vmatpush1.msra.mxu0 %v557
      %603 = vmatprep.subr.mxu0 %v560
      %604 = vmatpush1.msra.mxu0 %v559
      %605 = vmatprep.subr.mxu0 %v562
      %606 = vmatpush1.msra.mxu0 %v561
      %607 = vmatprep.subr.mxu0 %v564
      %608 = vmatpush1.msra.mxu0 %v563
      %609 = vmatprep.subr.mxu0 %v566
      %610 = vmatpush1.msra.mxu0 %v565
      %611 = vmatprep.subr.mxu0 %v568
      %612 = vmatpush1.msra.mxu0 %v567
      %613 = vmatprep.subr.mxu0 %v570
      %614 = vmatpush1.msra.mxu0 %v569
      %615 = vmatprep.subr.mxu0 %v572
      %616 = vmatpush1.msra.mxu0 %v571
      %617 = vmatprep.subr.mxu0 %v574
      %618 = vmatpush1.msra.mxu0 %v573
      %619 = vmatprep.subr.mxu0 %v576
      %620 = vmatpush1.msra.mxu0 %v575
      %621 = vmatprep.subr.mxu0 %v578
      %622 = vmatpush1.msra.mxu0 %v577
      %623 = vmatprep.subr.mxu0 %v580
      %624 = vmatpush1.msra.mxu0 %v579
      %625 = vmatprep.subr.mxu0 0.0
      %626 = vmatpush1.msra.mxu0 0.0
      %627 = vmatprep.subr.mxu0 0.0
      %628 = vmatpush1.msra.mxu0 0.0
      %629 = vmatprep.subr.mxu0 0.0
      %630 = vmatpush1.msra.mxu0 0.0
      %631 = vmatprep.subr.mxu0 0.0
      %632 = vmatpush1.msra.mxu0 0.0
      %633 = vmatprep.subr.mxu0 0.0
      %634 = vmatpush1.msra.mxu0 0.0
      %635 = vmatprep.subr.mxu0 0.0
      %636 = vmatpush1.msra.mxu0 0.0
      %637 = vmatprep.subr.mxu0 0.0
      %638 = vmatpush1.msra.mxu0 0.0
      %639 = vmatprep.subr.mxu0 0.0
      %640 = vmatpush1.msra.mxu0 0.0
      %641 = vmatprep.subr.mxu0 0.0
      %642 = vmatpush1.msra.mxu0 0.0
      %643 = vmatprep.subr.mxu0 0.0
      %644 = vmatpush1.msra.mxu0 0.0
      %645 = vmatprep.subr.mxu0 0.0
      %646 = vmatpush1.msra.mxu0 0.0
      %647 = vmatprep.subr.mxu0 0.0
      %648 = vmatpush1.msra.mxu0 0.0
      %649 = vmatprep.subr.mxu0 0.0
      %650 = vmatpush1.msra.mxu0 0.0
      %651 = vmatprep.subr.mxu0 0.0
      %652 = vmatpush1.msra.mxu0 0.0
      %653 = vmatprep.subr.mxu0 0.0
      %654 = vmatpush1.msra.mxu0 0.0
      %655 = vmatprep.subr.mxu0 0.0
      %656 = vmatpush1.msra.mxu0 0.0
      %657 = vmatprep.mubr.f32.mxu0 0.0
      %658 = vmatmul.mubr.f32.gmra.mrb[0].mxu0 %v517
      %v659 = vpop.f32.mrb[0].mxu0
      %v660 = vadd.f32 %v586, %v659
      %v661 = vpop.f32.mrb[0].mxu0
      %v662 = vadd.f32 %v590, %v661
      %663 = vmatprep.mubr.f32.mxu0 0.0
      %664 = vmatmul.mubr.f32.gmra.mrb[0].mxu0 %v518
      %v665 = vpop.f32.mrb[0].mxu0
      %v666 = vadd.f32 %v586, %v665
      %v667 = vpop.f32.mrb[0].mxu0
      %v668 = vadd.f32 %v590, %v667
      %669 = vmatprep.mubr.f32.mxu0 0.0
      %670 = vmatmul.mubr.f32.gmra.mrb[0].mxu0 %v519
      %v671 = vpop.f32.mrb[0].mxu0
      %v672 = vadd.f32 %v586, %v671
      %v673 = vpop.f32.mrb[0].mxu0
      %v674 = vadd.f32 %v590, %v673
      %675 = vmatprep.mubr.f32.mxu0 0.0
      %676 = vmatmul.mubr.f32.gmra.mrb[0].mxu0 %v520
      %v677 = vpop.f32.mrb[0].mxu0
      %v678 = vadd.f32 %v586, %v677
      %v679 = vpop.f32.mrb[0].mxu0
      %v680 = vadd.f32 %v590, %v679
      %681 = vmatprep.mubr.f32.mxu0 0.0
      %682 = vmatmul.mubr.f32.gmra.mrb[0].mxu0 %v521
      %v683 = vpop.f32.mrb[0].mxu0
      %v684 = vadd.f32 %v586, %v683
      %v685 = vpop.f32.mrb[0].mxu0
      %v686 = vadd.f32 %v590, %v685
      %687 = vmatprep.mubr.f32.mxu0 0.0
      %688 = vmatmul.mubr.f32.gmra.mrb[0].mxu0 %v522
      %v689 = vpop.f32.mrb[0].mxu0
      %v690 = vadd.f32 %v586, %v689
      %v691 = vpop.f32.mrb[0].mxu0
      %v692 = vadd.f32 %v590, %v691
      %693 = vmatprep.mubr.f32.mxu0 0.0
      %694 = vmatmul.mubr.f32.gmra.mrb[0].mxu0 %v523
      %v695 = vpop.f32.mrb[0].mxu0
      %v696 = vadd.f32 %v586, %v695
      %v697 = vpop.f32.mrb[0].mxu0
      %v698 = vadd.f32 %v590, %v697
      %699 = vmatprep.mubr.f32.mxu0 0.0
      %700 = vmatmul.mubr.f32.gmra.mrb[0].mxu0 %v524
      %v701 = vpop.f32.mrb[0].mxu0
      %v702 = vadd.f32 %v586, %v701
      %v703 = vpop.f32.mrb[0].mxu0
      %v704 = vadd.f32 %v590, %v703
      %705 = vmatprep.mubr.f32.mxu0 0.0
      %706 = vmatmul.mubr.f32.gmra.mrb[0].mxu0 %v525
      %v707 = vpop.f32.mrb[0].mxu0
      %v708 = vadd.f32 %v586, %v707
      %v709 = vpop.f32.mrb[0].mxu0
      %v710 = vadd.f32 %v590, %v709
      %711 = vmatprep.mubr.f32.mxu0 0.0
      %712 = vmatmul.mubr.f32.gmra.mrb[0].mxu0 %v526
      %v713 = vpop.f32.mrb[0].mxu0
      %v714 = vadd.f32 %v586, %v713
      %v715 = vpop.f32.mrb[0].mxu0
      %v716 = vadd.f32 %v590, %v715
      %717 = vmatprep.mubr.f32.mxu0 0.0
      %718 = vmatmul.mubr.f32.gmra.mrb[0].mxu0 %v527
      %v719 = vpop.f32.mrb[0].mxu0
      %v720 = vadd.f32 %v586, %v719
      %v721 = vpop.f32.mrb[0].mxu0
      %v722 = vadd.f32 %v590, %v721
      %723 = vmatprep.mubr.f32.mxu0 0.0
      %724 = vmatmul.mubr.f32.gmra.mrb[0].mxu0 %v528
      %v725 = vpop.f32.mrb[0].mxu0
      %v726 = vadd.f32 %v586, %v725
      %v727 = vpop.f32.mrb[0].mxu0
      %v728 = vadd.f32 %v590, %v727
      %729 = vmatprep.mubr.f32.mxu0 0.0
      %730 = vmatmul.mubr.f32.gmra.mrb[0].mxu0 %v529
      %v731 = vpop.f32.mrb[0].mxu0
      %v732 = vadd.f32 %v586, %v731
      %v733 = vpop.f32.mrb[0].mxu0
      %v734 = vadd.f32 %v590, %v733
      %735 = vmatprep.mubr.f32.mxu0 0.0
      %736 = vmatmul.mubr.f32.gmra.mrb[0].mxu0 %v530
      %v737 = vpop.f32.mrb[0].mxu0
      %v738 = vadd.f32 %v586, %v737
      %v739 = vpop.f32.mrb[0].mxu0
      %v740 = vadd.f32 %v590, %v739
      %741 = vmatprep.mubr.f32.mxu0 0.0
      %742 = vmatmul.mubr.f32.gmra.mrb[0].mxu0 %v531
      %v743 = vpop.f32.mrb[0].mxu0
      %v744 = vadd.f32 %v586, %v743
      %v745 = vpop.f32.mrb[0].mxu0
      %v746 = vadd.f32 %v590, %v745
      %747 = vmatprep.mubr.f32.mxu0 0.0
      %748 = vmatmul.mubr.f32.gmra.mrb[0].mxu0 %v532
      %v749 = vpop.f32.mrb[0].mxu0
      %v750 = vadd.f32 %v586, %v749
      %v751 = vpop.f32.mrb[0].mxu0
      %v752 = vadd.f32 %v590, %v751
      %753 = vmatprep.mubr.f32.mxu0 0.0
      %754 = vmatmul.mubr.f32.gmra.mrb[0].mxu0 %v533
      %v755 = vpop.f32.mrb[0].mxu0
      %v756 = vadd.f32 %v586, %v755
      %v757 = vpop.f32.mrb[0].mxu0
      %v758 = vadd.f32 %v590, %v757
      %759 = vmatprep.mubr.f32.mxu0 0.0
      %760 = vmatmul.mubr.f32.gmra.mrb[0].mxu0 %v534
      %v761 = vpop.f32.mrb[0].mxu0
      %v762 = vadd.f32 %v586, %v761
      %v763 = vpop.f32.mrb[0].mxu0
      %v764 = vadd.f32 %v590, %v763
      %765 = vmatprep.mubr.f32.mxu0 0.0
      %766 = vmatmul.mubr.f32.gmra.mrb[0].mxu0 %v535
      %v767 = vpop.f32.mrb[0].mxu0
      %v768 = vadd.f32 %v586, %v767
      %v769 = vpop.f32.mrb[0].mxu0
      %v770 = vadd.f32 %v590, %v769
      %771 = vmatprep.mubr.f32.mxu0 0.0
      %772 = vmatmul.mubr.f32.gmra.mrb[0].mxu0 %v536
      %v773 = vpop.f32.mrb[0].mxu0
      %v774 = vadd.f32 %v586, %v773
      %v775 = vpop.f32.mrb[0].mxu0
      %v776 = vadd.f32 %v590, %v775
      %777 = vmatprep.mubr.f32.mxu0 0.0
      %778 = vmatmul.mubr.f32.gmra.mrb[0].mxu0 %v537
      %v779 = vpop.f32.mrb[0].mxu0
      %v780 = vadd.f32 %v586, %v779
      %v781 = vpop.f32.mrb[0].mxu0
      %v782 = vadd.f32 %v590, %v781
      %783 = vmatprep.mubr.f32.mxu0 0.0
      %784 = vmatmul.mubr.f32.gmra.mrb[0].mxu0 %v538
      %v785 = vpop.f32.mrb[0].mxu0
      %v786 = vadd.f32 %v586, %v785
      %v787 = vpop.f32.mrb[0].mxu0
      %v788 = vadd.f32 %v590, %v787
      %789 = vmatprep.mubr.f32.mxu0 0.0
      %790 = vmatmul.mubr.f32.gmra.mrb[0].mxu0 %v539
      %v791 = vpop.f32.mrb[0].mxu0
      %v792 = vadd.f32 %v586, %v791
      %v793 = vpop.f32.mrb[0].mxu0
      %v794 = vadd.f32 %v590, %v793
      %795 = vmatprep.mubr.f32.mxu0 0.0
      %796 = vmatmul.mubr.f32.gmra.mrb[0].mxu0 %v540
      %v797 = vpop.f32.mrb[0].mxu0
      %v798 = vadd.f32 %v586, %v797
      %v799 = vpop.f32.mrb[0].mxu0
      %v800 = vadd.f32 %v590, %v799
      %801 = vmatprep.mubr.f32.mxu0 0.0
      %802 = vmatmul.mubr.f32.gmra.mrb[0].mxu0 %v541
      %v803 = vpop.f32.mrb[0].mxu0
      %v804 = vadd.f32 %v586, %v803
      %v805 = vpop.f32.mrb[0].mxu0
      %v806 = vadd.f32 %v590, %v805
      %807 = vmatprep.mubr.f32.mxu0 0.0
      %808 = vmatmul.mubr.f32.gmra.mrb[0].mxu0 %v542
      %v809 = vpop.f32.mrb[0].mxu0
      %v810 = vadd.f32 %v586, %v809
      %v811 = vpop.f32.mrb[0].mxu0
      %v812 = vadd.f32 %v590, %v811
      %813 = vmatprep.mubr.f32.mxu0 0.0
      %814 = vmatmul.mubr.f32.gmra.mrb[0].mxu0 %v543
      %v815 = vpop.f32.mrb[0].mxu0
      %v816 = vadd.f32 %v586, %v815
      %v817 = vpop.f32.mrb[0].mxu0
      %v818 = vadd.f32 %v590, %v817
      %819 = vmatprep.mubr.f32.mxu0 0.0
      %820 = vmatmul.mubr.f32.gmra.mrb[0].mxu0 %v544
      %v821 = vpop.f32.mrb[0].mxu0
      %v822 = vadd.f32 %v586, %v821
      %v823 = vpop.f32.mrb[0].mxu0
      %v824 = vadd.f32 %v590, %v823
      %825 = vmatprep.mubr.f32.mxu0 0.0
      %826 = vmatmul.mubr.f32.gmra.mrb[0].mxu0 %v545
      %v827 = vpop.f32.mrb[0].mxu0
      %v828 = vadd.f32 %v586, %v827
      %v829 = vpop.f32.mrb[0].mxu0
      %v830 = vadd.f32 %v590, %v829
      %831 = vmatprep.mubr.f32.mxu0 0.0
      %832 = vmatmul.mubr.f32.gmra.mrb[0].mxu0 %v546
      %v833 = vpop.f32.mrb[0].mxu0
      %v834 = vadd.f32 %v586, %v833
      %v835 = vpop.f32.mrb[0].mxu0
      %v836 = vadd.f32 %v590, %v835
      %837 = vmatprep.mubr.f32.mxu0 0.0
      %838 = vmatmul.mubr.f32.gmra.mrb[0].mxu0 %v547
      %v839 = vpop.f32.mrb[0].mxu0
      %v840 = vadd.f32 %v586, %v839
      %v841 = vpop.f32.mrb[0].mxu0
      %v842 = vadd.f32 %v590, %v841
      %843 = vmatprep.mubr.f32.mxu0 0.0
      %844 = vmatmul.mubr.f32.gmra.mrb[0].mxu0 %v548
      %v845 = vpop.f32.mrb[0].mxu0
      %v846 = vadd.f32 %v586, %v845
      %v847 = vpop.f32.mrb[0].mxu0
      %v848 = vadd.f32 %v590, %v847
      %849 = vdwg.mxu0
      %850 = vst [vmem:[#allocation9] sm:$0xff] %v660
      %851 = vst [vmem:[#allocation9 + $0x8] sm:$0xff] %v662
      %852 = vst [vmem:[#allocation9 + $0x10] sm:$0xff] %v666
      %853 = vst [vmem:[#allocation9 + $0x18] sm:$0xff] %v668
      %854 = vst [vmem:[#allocation9 + $0x20] sm:$0xff] %v672
      %855 = vst [vmem:[#allocation9 + $0x28] sm:$0xff] %v674
      %856 = vst [vmem:[#allocation9 + $0x30] sm:$0xff] %v678
      %857 = vst [vmem:[#allocation9 + $0x38] sm:$0xff] %v680
      %858 = vst [vmem:[#allocation9 + $0x40] sm:$0xff] %v684
      %859 = vst [vmem:[#allocation9 + $0x48] sm:$0xff] %v686
      %860 = vst [vmem:[#allocation9 + $0x50] sm:$0xff] %v690
      %861 = vst [vmem:[#allocation9 + $0x58] sm:$0xff] %v692
      %862 = vst [vmem:[#allocation9 + $0x60] sm:$0xff] %v696
      %863 = vst [vmem:[#allocation9 + $0x68] sm:$0xff] %v698
      %864 = vst [vmem:[#allocation9 + $0x70] sm:$0xff] %v702
      %865 = vst [vmem:[#allocation9 + $0x78] sm:$0xff] %v704
      %866 = vst [vmem:[#allocation9 + $0x80] sm:$0xff] %v708
      %867 = vst [vmem:[#allocation9 + $0x88] sm:$0xff] %v710
      %868 = vst [vmem:[#allocation9 + $0x90] sm:$0xff] %v714
      %869 = vst [vmem:[#allocation9 + $0x98] sm:$0xff] %v716
      %870 = vst [vmem:[#allocation9 + $0xa0] sm:$0xff] %v720
      %871 = vst [vmem:[#allocation9 + $0xa8] sm:$0xff] %v722
      %872 = vst [vmem:[#allocation9 + $0xb0] sm:$0xff] %v726
      %873 = vst [vmem:[#allocation9 + $0xb8] sm:$0xff] %v728
      %874 = vst [vmem:[#allocation9 + $0xc0] sm:$0xff] %v732
      %875 = vst [vmem:[#allocation9 + $0xc8] sm:$0xff] %v734
      %876 = vst [vmem:[#allocation9 + $0xd0] sm:$0xff] %v738
      %877 = vst [vmem:[#allocation9 + $0xd8] sm:$0xff] %v740
      %878 = vst [vmem:[#allocation9 + $0xe0] sm:$0xff] %v744
      %879 = vst [vmem:[#allocation9 + $0xe8] sm:$0xff] %v746
      %880 = vst [vmem:[#allocation9 + $0xf0] sm:$0xff] %v750
      %881 = vst [vmem:[#allocation9 + $0xf8] sm:$0xff] %v752
      %882 = vst [vmem:[#allocation9 + $0x100] sm:$0xff] %v756
      %883 = vst [vmem:[#allocation9 + $0x108] sm:$0xff] %v758
      %884 = vst [vmem:[#allocation9 + $0x110] sm:$0xff] %v762
      %885 = vst [vmem:[#allocation9 + $0x118] sm:$0xff] %v764
      %886 = vst [vmem:[#allocation9 + $0x120] sm:$0xff] %v768
      %887 = vst [vmem:[#allocation9 + $0x128] sm:$0xff] %v770
      %888 = vst [vmem:[#allocation9 + $0x130] sm:$0xff] %v774
      %889 = vst [vmem:[#allocation9 + $0x138] sm:$0xff] %v776
      %890 = vst [vmem:[#allocation9 + $0x140] sm:$0xff] %v780
      %891 = vst [vmem:[#allocation9 + $0x148] sm:$0xff] %v782
      %892 = vst [vmem:[#allocation9 + $0x150] sm:$0xff] %v786
      %893 = vst [vmem:[#allocation9 + $0x158] sm:$0xff] %v788
      %894 = vst [vmem:[#allocation9 + $0x160] sm:$0xff] %v792
      %895 = vst [vmem:[#allocation9 + $0x168] sm:$0xff] %v794
      %896 = vst [vmem:[#allocation9 + $0x170] sm:$0xff] %v798
      %897 = vst [vmem:[#allocation9 + $0x178] sm:$0xff] %v800
      %898 = vst [vmem:[#allocation9 + $0x180] sm:$0xff] %v804
      %899 = vst [vmem:[#allocation9 + $0x188] sm:$0xff] %v806
      %900 = vst [vmem:[#allocation9 + $0x190] sm:$0xff] %v810
      %901 = vst [vmem:[#allocation9 + $0x198] sm:$0xff] %v812
      %902 = vst [vmem:[#allocation9 + $0x1a0] sm:$0xff] %v816
      %903 = vst [vmem:[#allocation9 + $0x1a8] sm:$0xff] %v818
      %904 = vst [vmem:[#allocation9 + $0x1b0] sm:$0xff] %v822
      %905 = vst [vmem:[#allocation9 + $0x1b8] sm:$0xff] %v824
      %906 = vst [vmem:[#allocation9 + $0x1c0] sm:$0xff] %v828
      %907 = vst [vmem:[#allocation9 + $0x1c8] sm:$0xff] %v830
      %908 = vst [vmem:[#allocation9 + $0x1d0] sm:$0xff] %v834
      %909 = vst [vmem:[#allocation9 + $0x1d8] sm:$0xff] %v836
      %910 = vst [vmem:[#allocation9 + $0x1e0] sm:$0xff] %v840
      %911 = vst [vmem:[#allocation9 + $0x1e8] sm:$0xff] %v842
      %912 = vst [vmem:[#allocation9 + $0x1f0] sm:$0xff] %v846
      %913 = vst [vmem:[#allocation9 + $0x1f8] sm:$0xff] %v848
    $region37: #{tpu_custom_call.1} parent=1 // pred_fallthru
      _
    // Predicated region
    $region38: #{tpu_custom_call.1} parent=1 // pred_check
      _
    $region39: #{tpu_custom_call.1} parent=1 // pred_check_branch
      %915 = sbr.rel (0) target = $region41
    $region40: #{tpu_custom_call.1} parent=1 // pred_region
      %s917 = ssub.s32 8192, 8192
      %918 = vsyncadd [#allocation5], %s917
      %s919 = sshll.u32 [#allocation9], 4
      %s920 = int_to_ptr.vmem [resolvable:$true] %s919
      %925 = dma.vmem_to_hbm [thread:$0]  %s920, 8192, %s4, [#allocation5], 256, 256, 16
    $region41: #{tpu_custom_call.1} parent=1 // pred_fallthru
      _
    // Predicated region
    $region42: #{tpu_custom_call.1} parent=1 // pred_check
      _
    $region43: #{tpu_custom_call.1} parent=1 // pred_check_branch
      %927 = sbr.rel (0) target = $region45
    $region44: #{tpu_custom_call.1} parent=1 // pred_region
      %928 = dma.done [#allocation5], 8192
    $region45: #{tpu_custom_call.1} parent=1 // pred_fallthru
      _
    %929 = vsyncpa [#allocation4], 1
    %930 = vsyncpa [#allocation7], 1
    %931 = vsyncpa [#allocation5], 1

</llo_original>
